<compile_context>
chip_gen: v5e
topology: v5e:2x2
jax: 0.10.0
libtpu: 0.0.40
codegen_flags: <defaults>
</compile_context>

<pallas_src>
import math

import jax
import jax.numpy as jnp
import numpy as np
from jax.experimental import pallas as pl
from jax.experimental.pallas import tpu as pltpu


# ---------------------------------------------------------------------------
# Kernel
# ---------------------------------------------------------------------------
def _pos_emb_kernel(scale_ref, bias_ref, o_ref):
    """One (TILE_R, W) output tile: o[r, l] = sin(global_row(r) * scale[l] + bias[l]).

    scale/bias are (1, W) per-lane constants built in the wrapper.  The global
    first row of this tile is folded into `bias` once per grid step, so the
    per-element work is a single fma plus a single sin.  (The row index is
    generated as an int32 iota and converted once -- float iota is avoided for
    Mosaic compatibility.)
    """
    tile_rows = o_ref.shape[0]
    base = (pl.program_id(0) * tile_rows).astype(jnp.float32)      # scalar
    scale = scale_ref[...]                                         # (1, W)
    bias = bias_ref[...] + base * scale                            # (1, W) once/tile
    r = jax.lax.broadcasted_iota(jnp.int32, o_ref.shape, 0).astype(jnp.float32)
    o_ref[...] = jnp.sin(r * scale + bias).astype(o_ref.dtype)


# ---------------------------------------------------------------------------
# Tiling / pallas_call plumbing
# ---------------------------------------------------------------------------
_VMEM_LIMIT_BYTES = 24 * 1024 * 1024    # > 2 x 8 MiB output buffers + inputs;
                                        # above v5e's 16 MiB default scoped limit,
                                        # well under v7x's 64 MiB physical VMEM.


def _per_buffer_budget_bytes():
    """~4-8 MiB per output buffer: big enough to amortize the ~0.35us per-step
    overhead, small enough that the double-buffered tile fits comfortably on
    every generation (v7x has only 64 MiB VMEM per TensorCore)."""
    try:
        cap = int(pltpu.get_tpu_info().vmem_capacity_bytes)
    except Exception:       # no TPU visible at trace time / interpret mode
        cap = 64 * 1024 * 1024
    return max(4 * 1024 * 1024, min(8 * 1024 * 1024, cap // 8))


def _choose_tile_rows(width, total_rows, itemsize, max_tile_rows=None):
    rows = _per_buffer_budget_bytes() // (width * itemsize)
    if max_tile_rows is not None:
        rows = min(rows, max_tile_rows)
    rows = max(8, (rows // 8) * 8)          # sublane-dim multiple of 8
    if rows >= total_rows:
        return total_rows                   # single full-extent block is legal
    return rows


def _build_rows(total_rows, width, scale, bias, dtype, max_tile_rows=None):
    """(total_rows, width) table with row r, lane l = sin(r*scale[l] + bias[l])."""
    itemsize = np.dtype(dtype).itemsize
    tile = _choose_tile_rows(width, total_rows, itemsize, max_tile_rows)
    num_steps = (total_rows + tile - 1) // tile      # ragged last block is fine

    out_shape = jax.ShapeDtypeStruct((total_rows, width), dtype)
    in_specs = [pl.BlockSpec((1, width), lambda i: (0, 0)),
                pl.BlockSpec((1, width), lambda i: (0, 0))]
    out_specs = pl.BlockSpec((tile, width), lambda i: (i, 0))

    # Prefer CORE_PARALLEL so v7x's two TensorCores split the row grid; fall
    # back to "parallel" if the current jax/Mosaic/platform rejects it.
    semantics_options = []
    core_parallel = getattr(pltpu, "CORE_PARALLEL", None)
    if num_steps > 1 and core_parallel is not None:
        semantics_options.append((core_parallel,))
    semantics_options.append(("parallel",))

    last_err = None
    for sem in semantics_options:
        try:
            fn = pl.pallas_call(
                _pos_emb_kernel,
                out_shape=out_shape,
                grid=(num_steps,),
                in_specs=in_specs,
                out_specs=out_specs,
                compiler_params=pltpu.CompilerParams(
                    dimension_semantics=sem,
                    vmem_limit_bytes=_VMEM_LIMIT_BYTES,
                ),
            )
            return fn(scale, bias)
        except Exception as err:            # lowering rejection -> safe fallback
            last_err = err
    raise last_err


# ---------------------------------------------------------------------------
# Table construction
# ---------------------------------------------------------------------------
_MAX_FLAT_LANES = 8192     # cap on the lane-dense width lcm(D, 128)


def make_positional_table(num_embeddings, embedding_dim, theta=10000.0,
                          dtype=jnp.float32, max_tile_rows=None):
    """Build the (num_embeddings, embedding_dim) sinusoidal table with Pallas."""
    N, D = int(num_embeddings), int(embedding_dim)

    # Lane-dense output width: a common multiple of D and 128, so every vector
    # store is a full unmasked 128-lane vst and the row-major reshape back to
    # (N, D) is free.  Fall back to W == D (masked stores) only for huge lcm.
    W = math.lcm(D, 128)
    if W > _MAX_FLAT_LANES:
        W = D   # TODO(synk): awkward D (huge lcm(D,128)) keeps masked stores.
    p = W // D                                   # positions packed per row

    lane = jnp.arange(W)
    d = lane % D                                 # embedding index of this lane
    off = (lane // D).astype(jnp.float32)        # position offset within a row
    two_i = (2 * (d // 2)).astype(jnp.float32)
    freq = jnp.exp(two_i * (-(math.log(theta) / D)))          # theta^(-2i/D)
    # cos(x) = sin(x + pi/2): one transcendental per element.
    phase = jnp.where(d % 2 == 0, 0.0, math.pi / 2.0).astype(jnp.float32)

    scale = (p * freq)[None, :].astype(jnp.float32)           # (1, W)
    bias = (off * freq + phase)[None, :].astype(jnp.float32)  # (1, W)

    n_pad = -(-N // p) * p                       # == N whenever p divides N
    rows = n_pad // p                            # exact kernel output rows
    assert rows < (1 << 24), "flat row index must stay exact in float32"

    flat = _build_rows(rows, W, scale, bias, dtype, max_tile_rows)   # (rows, W)
    table = flat.reshape(n_pad, D)               # free: contiguous row-major
    if n_pad != N:
        # Only when p does not divide N (costs one extra slice pass).
        table = table[:N]
    return table


class PositionalEmbedding:
    """JAX/Pallas equivalent of the PyTorch PositionalEmbedding module."""

    def __init__(self, num_embeddings, embedding_dim, theta=10000.0,
                 dtype=jnp.float32):
        self.num_embeddings = num_embeddings
        self.embedding_dim = embedding_dim
        self.theta = theta
        # Buffer of shape (1, num_embeddings, embedding_dim), like PyTorch.
        self.weight = make_positional_table(
            num_embeddings, embedding_dim, theta, dtype=dtype)[None]

    def __call__(self, x):
        # forward(x) = weight[:, :x.shape[1]]
        return self.weight[:, :x.shape[1]]


# ---------------------------------------------------------------------------
# Reference + test
# ---------------------------------------------------------------------------
def _reference_table(num_embeddings, embedding_dim, theta=10000.0):
    """Pure-jnp reference matching the PyTorch _register()."""
    position = jnp.arange(num_embeddings, dtype=jnp.float32)[:, None]
    div_term = jnp.exp(
        jnp.arange(0, embedding_dim, 2, dtype=jnp.float32)
        * -(math.log(theta) / embedding_dim))
    w = jnp.zeros((num_embeddings, embedding_dim), jnp.float32)
    w = w.at[:, 0::2].set(jnp.sin(position * div_term))
    w = w.at[:, 1::2].set(jnp.cos(position * div_term))
    return w[None]


def _tol(max_pos):
    # cos lanes use sin(x + pi/2); the f32 rounding of the shifted argument
    # grows with |x| <= max_pos (bound ~1.2e-7 * max_pos).  Keep >10x margin.
    return 1e-5 + 2e-6 * max_pos


if __name__ == "__main__":
    num_embeddings, embedding_dim = 16, 32
    batch, seq = 2, 8

    key = jax.random.PRNGKey(0)
    x = jax.random.normal(key, (batch, seq, embedding_dim), dtype=jnp.float32)

    # Module forward at the small spec shapes.
    module = PositionalEmbedding(num_embeddings, embedding_dim)
    out = jax.block_until_ready(module(x))
    ref = _reference_table(num_embeddings, embedding_dim)[:, :seq]
    assert out.shape == (1, seq, embedding_dim), out.shape
    assert jnp.allclose(out, ref, atol=_tol(num_embeddings)), "mismatch (small)"

    # D % 128 == 0 path (p == 1: no pad, no slice) at larger position count.
    big = jax.block_until_ready(make_positional_table(264, 128))
    assert jnp.allclose(big, _reference_table(264, 128)[0],
                        atol=_tol(264)), "mismatch (wide D)"

    # Multi-step grid + ragged last block + pad/slice path (p=4 does not divide 70).
    rag = jax.block_until_ready(make_positional_table(70, 32, max_tile_rows=8))
    assert jnp.allclose(rag, _reference_table(70, 32)[0],
                        atol=_tol(70)), "mismatch (ragged grid)"

    # bf16 table (halved HBM write bytes / VMEM per tile).
    b16 = jax.block_until_ready(make_positional_table(40, 64, dtype=jnp.bfloat16))
    assert jnp.allclose(b16.astype(jnp.float32), _reference_table(40, 64)[0],
                        atol=2e-2), "mismatch (bf16)"

    print("KERNEL_OK")
</pallas_src>

<mosaic_0001>
module attributes {stable_mosaic.version = 11 : i64} {
  func.func @_pos_emb_kernel(%arg0: i32, %arg1: memref<1x128xf32, #tpu.memory_space<vmem>>, %arg2: memref<1x128xf32, #tpu.memory_space<vmem>>, %arg3: memref<4x128xf32, #tpu.memory_space<vmem>>) attributes {dimension_semantics = [#tpu.dimension_semantics<parallel>], iteration_bounds = array<i64: 1>, scalar_prefetch = 0 : i64, scratch_operands = 0 : i64, tpu.core_type = #tpu.core_type<tc>, window_params = [{pipeline_mode = #tpu.pipeline_mode<synchronous>, transform_indices = @transform_0, window_bounds = array<i64: 1, 128>}, {pipeline_mode = #tpu.pipeline_mode<synchronous>, transform_indices = @transform_1, window_bounds = array<i64: 1, 128>}, {transform_indices = @transform_2, window_bounds = array<i64: 4, 128>}]} {
    %c4_i32 = arith.constant 4 : i32
    %0 = arith.muli %arg0, %c4_i32 : i32
    %1 = arith.sitofp %0 : i32 to f32
    %c0 = arith.constant 0 : index
    %c0_0 = arith.constant 0 : index
    %2 = vector.load %arg1[%c0, %c0_0] : memref<1x128xf32, #tpu.memory_space<vmem>>, vector<1x128xf32>
    %c0_1 = arith.constant 0 : index
    %c0_2 = arith.constant 0 : index
    %3 = vector.load %arg2[%c0_1, %c0_2] : memref<1x128xf32, #tpu.memory_space<vmem>>, vector<1x128xf32>
    %4 = vector.broadcast %1 : f32 to vector<1x128xf32>
    %5 = arith.mulf %4, %2 : vector<1x128xf32>
    %6 = arith.addf %3, %5 : vector<1x128xf32>
    %7 = tpu.iota {dimensions = array<i32: 0>} : vector<4x128xi32>
    %8 = arith.sitofp %7 : vector<4x128xi32> to vector<4x128xf32>
    %9 = vector.broadcast %2 : vector<1x128xf32> to vector<4x128xf32>
    %10 = arith.mulf %8, %9 : vector<4x128xf32>
    %11 = vector.broadcast %6 : vector<1x128xf32> to vector<4x128xf32>
    %12 = arith.addf %10, %11 : vector<4x128xf32>
    %13 = math.sin %12 : vector<4x128xf32>
    %c0_3 = arith.constant 0 : index
    %c0_4 = arith.constant 0 : index
    %14 = vector.load %arg3[%c0_3, %c0_4] : memref<4x128xf32, #tpu.memory_space<vmem>>, vector<4x128xf32>
    tpu.vector_store %arg3[%c0_3, %c0_4], %13 {strides = array<i32>} : memref<4x128xf32, #tpu.memory_space<vmem>>, vector<4x128xf32>,
    return
  }
  func.func @transform_0(%arg0: i32) -> (i32, i32) {
    %c0_i32 = arith.constant 0 : i32
    %c0_i32_0 = arith.constant 0 : i32
    %c0_i32_1 = arith.constant 0 : i32
    return %c0_i32, %c0_i32_0 : i32, i32
  }
  func.func @transform_1(%arg0: i32) -> (i32, i32) {
    %c0_i32 = arith.constant 0 : i32
    %c0_i32_0 = arith.constant 0 : i32
    %c0_i32_1 = arith.constant 0 : i32
    return %c0_i32, %c0_i32_0 : i32, i32
  }
  func.func @transform_2(%arg0: i32) -> (i32, i32) {
    %c0_i32 = arith.constant 0 : i32
    %c0_i32_0 = arith.constant 0 : i32
    return %arg0, %c0_i32 : i32, i32
  }
}

</mosaic_0001>

<llo_original>
// kernel: tpu_custom_call.1
$region0: #{tpu_custom_call.1}
  #allocation0 [shape = 'u32[]', space=smem, size = 0x4, offset = 0x4, fixed_abs, tag = 'smem constant byte address 0x4 - core index']
  #allocation1 [shape = 'u32[72,128]{1,0:T(1,128)}', space=vmem, size = 0x9000, scoped, tag = 'internal scratch']
  %s0 = inlined_call_operand.hbm [shape: f32[1,128], index: 0, kind: input, shape index: {}]
  %s1 = inlined_call_operand.hbm [shape: f32[1,128], index: 1, kind: input, shape index: {}]
  %s2 = inlined_call_operand.hbm [shape: f32[4,128], index: 2, kind: output, shape index: {}]
  %s3 = sld [smem:[#allocation0]]
  $region26: #{tpu_custom_call.1} parent=0
    _
  %s5 = ssub.s32 1, %s3
  %s6 = scalar_select 0, %s5, %s3
  $region1: #{tpu_custom_call.1} parent=0
    #allocation2 [shape = 'u8[512]{0}', space=vmem, size = 0x400, scoped, tag = 'input window, operand 0, single buffered']
    #allocation3 [shape = 's32[1]{0}', space=sflag, size = 0x4, scoped, tag = 'scoped memory for tpu_custom_call.1']
    #allocation4 [shape = 's32[1]{0}', space=sflag, size = 0x4, scoped, tag = 'scoped memory for tpu_custom_call.1']
    #allocation5 [shape = 'u8[512]{0}', space=vmem, size = 0x400, scoped, tag = 'input window, operand 1, single buffered']
    #allocation6 [shape = 's32[1]{0}', space=sflag, size = 0x4, scoped, tag = 'scoped memory for tpu_custom_call.1']
    #allocation7 [shape = 'u8[2048]{0}', space=vmem, size = 0x800, scoped, tag = 'output window, operand 0, single buffered']
    %7 = vsyncpa [#allocation3], 0
    %8 = vsyncpa [#allocation6], 0
    %9 = vsyncpa [#allocation4], 0
    // Predicated region
    $region2: #{tpu_custom_call.1} parent=1 // pred_check
      _
    $region3: #{tpu_custom_call.1} parent=1 // pred_check_branch
      %11 = sbr.rel (0) target = $region5
    $region4: #{tpu_custom_call.1} parent=1 // pred_region
      %13 = vsyncadd [#allocation3], 0
      %s15 = sshll.u32 %s0, 4
      %s16 = int_to_ptr.hbm [resolvable:$true] %s15
      %s17 = sshll.u32 [#allocation2], 4
      %s18 = int_to_ptr.vmem [resolvable:$true] %s17
      %20 = dma.hbm_to_vmem [thread:$0]  %s16, 16, %s18, [#allocation3]
    $region5: #{tpu_custom_call.1} parent=1 // pred_fallthru
      _
    // Predicated region
    $region6: #{tpu_custom_call.1} parent=1 // pred_check
      _
    $region7: #{tpu_custom_call.1} parent=1 // pred_check_branch
      %22 = sbr.rel (0) target = $region9
    $region8: #{tpu_custom_call.1} parent=1 // pred_region
      %24 = vsyncadd [#allocation6], 0
      %s26 = sshll.u32 %s1, 4
      %s27 = int_to_ptr.hbm [resolvable:$true] %s26
      %s28 = sshll.u32 [#allocation5], 4
      %s29 = int_to_ptr.vmem [resolvable:$true] %s28
      %31 = dma.hbm_to_vmem [thread:$0]  %s27, 16, %s29, [#allocation6]
    $region9: #{tpu_custom_call.1} parent=1 // pred_fallthru
      _
    // Predicated region
    $region10: #{tpu_custom_call.1} parent=1 // pred_check
      _
    $region11: #{tpu_custom_call.1} parent=1 // pred_check_branch
      %33 = sbr.rel (0) target = $region13
    $region12: #{tpu_custom_call.1} parent=1 // pred_region
      %35 = dma.done [#allocation3], 16
    $region13: #{tpu_custom_call.1} parent=1 // pred_fallthru
      _
    // Predicated region
    $region14: #{tpu_custom_call.1} parent=1 // pred_check
      _
    $region15: #{tpu_custom_call.1} parent=1 // pred_check_branch
      %37 = sbr.rel (0) target = $region17
    $region16: #{tpu_custom_call.1} parent=1 // pred_region
      %39 = dma.done [#allocation6], 16
    $region17: #{tpu_custom_call.1} parent=1 // pred_fallthru
      _
    %s40 = smul.u32 0, 4
    %s41 = scvt.s32.f32 %s40
    %v42 = vld [vmem:[#allocation2] sm:$0x1]
    %v43 = vld [vmem:[#allocation5] sm:$0x1]
    %v44 = vstv %s41
    %v45 = vmul.f32 %v44, %v42
    %v46 = vadd.f32 %v43, %v45
    %v47 = vlaneseq
    %v48 = vshrl.u32 %v47, 7
    %v49 = vcvt.s32.f32 %v48
    %v51 = vperm.slane %v42, 0
    %v53 = vmul.f32 %v49, %v51
    %v55 = vperm.slane %v46, 0
    %v57 = vadd.f32 %v53, %v55
    %v58 = vand.u32 2147483647, %v57
    %vm59 = vcmp.le.f32.partialorder %v58, 0.7853982
    %vm60 = vcmp.lt.s32.totalorder %v57, 0
    %v61 = vand.u32 %v57, 2139095040
    %v62 = vshrl.u32 %v61, 23
    %v63 = vsub.s32 %v62, 127
    %v64 = vand.u32 2147483647, %v57
    %v65 = vand.u32 %v64, 8388607
    %v66 = vor.u32 %v65, 8388608
    %v67 = vsub.s32 0, %v66
    %v68 = vadd.s32 %v63, 1
    %vm69 = vcmp.gt.s32.totalorder %v68, 0
    %v70 = vsel %vm69, %v68, 0
    %v71 = vshrl.u32 %v70, 5
    %v72 = vand.u32 %v70, 31
    %v73 = vsub.s32 32, %v72
    %v74 = vshrl.u32 683565275, %v73
    %v75 = vshll.u32 683565275, %v72
    %v76 = vshrl.u32 2475754826, %v73
    %v77 = vor.u32 %v75, %v76
    %v78 = vshll.u32 2475754826, %v72
    %v79 = vshrl.u32 2131351028, %v73
    %v80 = vor.u32 %v78, %v79
    %v81 = vshll.u32 2131351028, %v72
    %v82 = vshrl.u32 2102212464, %v73
    %v83 = vor.u32 %v81, %v82
    %v84 = vshll.u32 2102212464, %v72
    %v85 = vshrl.u32 920167782, %v73
    %v86 = vor.u32 %v84, %v85
    %v87 = vshll.u32 920167782, %v72
    %v88 = vshrl.u32 1326507024, %v73
    %v89 = vor.u32 %v87, %v88
    %vm90 = vcmp.lt.s32.totalorder %v71, 1
    %vm91 = vcmp.lt.s32.totalorder %v71, 2
    %vm92 = vcmp.lt.s32.totalorder %v71, 3
    %vm93 = vcmp.lt.s32.totalorder %v71, 4
    %v94 = vsel %vm90, %v74, %v77
    %v95 = vsel %vm93, %v83, 2102212464
    %v96 = vsel %vm92, %v80, %v95
    %v97 = vsel %vm91, %v94, %v96
    %v98 = vsel %vm90, %v77, %v80
    %v99 = vsel %vm93, %v86, 920167782
    %v100 = vsel %vm92, %v83, %v99
    %v101 = vsel %vm91, %v98, %v100
    %v102 = vsel %vm90, %v80, %v83
    %v103 = vsel %vm93, %v89, 1326507024
    %v104 = vsel %vm92, %v86, %v103
    %v105 = vsel %vm91, %v102, %v104
    %v106 = vshll.u32 %v66, 8
    %v107 = vand.u32 %v106, 65535
    %v108 = vshrl.u32 %v106, 16
    %v109 = vand.u32 %v105, 65535
    %v110 = vshrl.u32 %v105, 16
    %v111 = vmul.u32 %v107, %v109
    %v112 = vmul.u32 %v107, %v110
    %v113 = vmul.u32 %v108, %v109
    %v114 = vmul.u32 %v108, %v110
    %v115 = vshll.u32 %v112, 16
    %v116 = vshrl.u32 %v112, 16
    %v117 = vshll.u32 %v113, 16
    %v118 = vshrl.u32 %v113, 16
    %vm119 = vc.u32 %v111, %v115
    %v120 = vsel %vm119, 1, 0
    %v121 = vadd.s32 %v111, %v115
    %v122 = vadd.s32 %v114, %v120
    %vm123 = vc.u32 %v121, %v117
    %v124 = vsel %vm123, 1, 0
    %v125 = vadd.s32 %v121, %v117
    %v126 = vadd.s32 %v122, %v124
    %v127 = vadd.s32 %v126, %v116
    %v128 = vadd.s32 %v127, %v118
    %v129 = vand.u32 %v106, 65535
    %v130 = vshrl.u32 %v106, 16
    %v131 = vand.u32 %v101, 65535
    %v132 = vshrl.u32 %v101, 16
    %v133 = vmul.u32 %v129, %v131
    %v134 = vmul.u32 %v129, %v132
    %v135 = vmul.u32 %v130, %v131
    %v136 = vmul.u32 %v130, %v132
    %v137 = vshll.u32 %v134, 16
    %v138 = vshrl.u32 %v134, 16
    %v139 = vshll.u32 %v135, 16
    %v140 = vshrl.u32 %v135, 16
    %vm141 = vc.u32 %v133, %v137
    %v142 = vsel %vm141, 1, 0
    %v143 = vadd.s32 %v133, %v137
    %v144 = vadd.s32 %v136, %v142
    %vm145 = vc.u32 %v143, %v139
    %v146 = vsel %vm145, 1, 0
    %v147 = vadd.s32 %v143, %v139
    %v148 = vadd.s32 %v144, %v146
    %v149 = vadd.s32 %v148, %v138
    %v150 = vadd.s32 %v149, %v140
    %v151 = vmul.u32 %v106, %v97
    %v152 = vadd.s32 %v128, %v147
    %vm153 = vc.u32 %v128, %v147
    %v154 = vadd.s32 %v150, 1
    %v155 = vsel %vm153, %v154, %v150
    %v156 = vadd.s32 %v151, %v155
    %v157 = vadd.s32 %v156, 536870912
    %v158 = vshrl.u32 %v157, 30
    %v159 = vshll.u32 %v158, 30
    %v160 = vsub.s32 %v156, %v159
    %vm161 = vcmp.lt.s32.totalorder %v160, 0
    %v162 = vsub.s32 0, %v160
    %v163 = vsel %vm161, %v162, %v160
    %v164 = vclz %v163
    %v165 = vsub.s32 %v164, 2
    %vm166 = vcmp.gt.s32.totalorder 0, %v165
    %v167 = vsel %vm166, 0, %v165
    %v168 = vsub.s32 32, %v167
    %v169 = vshll.u32 %v160, %v167
    %v170 = vshrl.u32 %v152, %v168
    %v171 = vor.u32 %v169, %v170
    %v172 = vsub.s32 4294967266, %v167
    %v173 = vadd.s32 %v172, 127
    %v174 = vshll.u32 %v173, 23
    %v175 = vor.u32 4788187, %v174
    %v176 = vand.u32 2147483647, %v175
    %v178 = vcvt.s32.f32 %v171
    %v179 = vmul.f32 %v178, %v176
    %v180 = vxor.u32 %v179, 2147483648
    %v181 = vsel %vm60, %v180, %v179
    %v182 = vsub.s32 4, %v158
    %v183 = vsel %vm60, %v182, %v158
    %v184 = vsel %vm59, %v57, %v181
    %v185 = vsel %vm59, 0, %v183
    %v186 = vmul.f32 %v184, %v184
    %v187 = vmul.f32 %v186, -0.001358992
    %v188 = vadd.f32 %v187, 0.041655596
    %v189 = vmul.f32 %v186, %v188
    %v190 = vadd.f32 %v189, -0.4999988
    %v191 = vmul.f32 %v186, %v190
    %v192 = vadd.f32 1.0, %v191
    %v193 = vmul.f32 %v184, %v184
    %v194 = vmul.f32 %v193, -0.00019511016
    %v195 = vadd.f32 %v194, 0.008332121
    %v196 = vmul.f32 %v193, %v195
    %v197 = vadd.f32 %v196, -0.16666654
    %v198 = vmul.f32 %v193, %v197
    %v199 = vadd.f32 %v198, 1.0
    %v200 = vmul.f32 %v199, %v184
    %vm201 = vweird.f32 %v57
    %v202 = vadd.s32 %v185, 3
    %v203 = vand.u32 %v202, 3
    %vm204 = vcmp.lt.s32.totalorder %v203, 2
    %vm205 = vcmp.eq.s32.totalorder %v203, 0
    %v206 = vxor.u32 %v200, 2147483648
    %v207 = vsel %vm205, %v192, %v206
    %vm208 = vcmp.eq.s32.totalorder %v203, 2
    %v209 = vxor.u32 %v192, 2147483648
    %v210 = vsel %vm208, %v209, %v200
    %v211 = vsel %vm204, %v207, %v210
    %v212 = vsel %vm201, nan, %v211
    %213 = vst [vmem:[#allocation7] sm:$0xf] %v212
    // Predicated region
    $region18: #{tpu_custom_call.1} parent=1 // pred_check
      _
    $region19: #{tpu_custom_call.1} parent=1 // pred_check_branch
      %215 = sbr.rel (0) target = $region21
    $region20: #{tpu_custom_call.1} parent=1 // pred_region
      %217 = vsyncadd [#allocation4], 0
      %s219 = sshll.u32 [#allocation7], 4
      %s220 = int_to_ptr.vmem [resolvable:$true] %s219
      %s221 = sshll.u32 %s2, 4
      %s222 = int_to_ptr.hbm [resolvable:$true] %s221
      %224 = dma.vmem_to_hbm [thread:$0]  %s220, 64, %s222, [#allocation4]
    $region21: #{tpu_custom_call.1} parent=1 // pred_fallthru
      _
    // Predicated region
    $region22: #{tpu_custom_call.1} parent=1 // pred_check
      _
    $region23: #{tpu_custom_call.1} parent=1 // pred_check_branch
      %226 = sbr.rel (0) target = $region25
    $region24: #{tpu_custom_call.1} parent=1 // pred_region
      %228 = dma.done [#allocation4], 64
    $region25: #{tpu_custom_call.1} parent=1 // pred_fallthru
      _
    %229 = vsyncpa [#allocation3], 1
    %230 = vsyncpa [#allocation6], 1
    %231 = vsyncpa [#allocation4], 1

</llo_original>
